<compile_context>
chip_gen: v6e
topology: v6e:2x2x1
jax: 0.10.0
libtpu: 0.0.40
codegen_flags: <defaults>
</compile_context>

<pallas_src>
import jax
import jax.numpy as jnp
from jax.experimental import pallas as pl
from jax.experimental.pallas import tpu as pltpu


# ----------------------- packed path (small / demo shapes) -----------------------
def _experts_packed_kernel(x_ref, w_ref, o_ref):
    """x_ref: (E, N, D), w_ref: (E, D, D), o_ref: (N, E*D) lane-dense slab."""
    E = x_ref.shape[0]
    outs = []
    for e in range(E):  # fully unrolled: E MXU pushes back-to-back in one invocation
        acc = jnp.dot(x_ref[e], w_ref[e], preferred_element_type=jnp.float32)
        outs.append(jnp.maximum(acc, 0.0))  # ReLU in f32
    slab = outs[0] if E == 1 else jnp.concatenate(outs, axis=-1)
    o_ref[...] = slab.astype(o_ref.dtype)   # single unmasked, lane-dense store


def _experts_packed(x, w1, out_dtype):
    E, N, D = x.shape
    in_b = jnp.dtype(x.dtype).itemsize
    out_b = jnp.dtype(out_dtype).itemsize
    slab = pl.pallas_call(
        _experts_packed_kernel,
        out_shape=jax.ShapeDtypeStruct((N, E * D), out_dtype),
        grid_spec=pltpu.PrefetchScalarGridSpec(
            num_scalar_prefetch=0,
            grid=(1,),
            in_specs=[
                pl.BlockSpec((E, N, D), lambda i: (0, 0, 0)),
                pl.BlockSpec((E, D, D), lambda i: (0, 0, 0)),
            ],
            out_specs=pl.BlockSpec((N, E * D), lambda i: (0, 0)),
        ),
        compiler_params=pltpu.CompilerParams(
            dimension_semantics=("arbitrary",),
        ),
        cost_estimate=pl.CostEstimate(
            flops=2 * E * N * D * D,
            transcendentals=0,
            bytes_accessed=in_b * (E * N * D + E * D * D) + out_b * E * N * D,
        ),
    )(x, w1)
    # Undo the lane-packing: (N, E*D) -> (N, E, D) -> (E, N, D).
    return jnp.transpose(slab.reshape(N, E, D), (1, 0, 2))


# -------------------- tiled fallback path (production shapes) --------------------
def _experts_tiled_kernel(x_ref, w_ref, o_ref):
    """x_ref: (TN, D), w_ref: (D, D), o_ref: (TN, D) — expert dim squeezed out."""
    acc = jnp.dot(x_ref[...], w_ref[...], preferred_element_type=jnp.float32)
    o_ref[...] = jnp.maximum(acc, 0.0).astype(o_ref.dtype)


def _pick_tile_n(n):
    for t in (512, 256, 128, 64, 32, 16, 8):
        if t <= n and n % t == 0:
            return t
    return n


def _experts_tiled(x, w1, out_dtype, tile_n):
    E, N, D = x.shape
    if tile_n is None:
        tile_n = _pick_tile_n(N)
    assert N % tile_n == 0, "tile_n must divide the token dimension"
    in_b = jnp.dtype(x.dtype).itemsize
    out_b = jnp.dtype(out_dtype).itemsize
    return pl.pallas_call(
        _experts_tiled_kernel,
        out_shape=jax.ShapeDtypeStruct((E, N, D), out_dtype),
        grid_spec=pltpu.PrefetchScalarGridSpec(
            num_scalar_prefetch=0,
            grid=(E, N // tile_n),          # N-tile axis innermost: weight block reused
            in_specs=[
                pl.BlockSpec((None, tile_n, D), lambda e, n: (e, n, 0)),
                pl.BlockSpec((None, D, D), lambda e, n: (e, 0, 0)),  # independent of n
            ],
            out_specs=pl.BlockSpec((None, tile_n, D), lambda e, n: (e, n, 0)),
        ),
        compiler_params=pltpu.CompilerParams(
            dimension_semantics=("parallel", "parallel"),   # shardable across 2 TCs on v7x
            vmem_limit_bytes=48 * 1024 * 1024,              # safe on v5e/v6e/v7x
        ),
        cost_estimate=pl.CostEstimate(
            flops=2 * E * N * D * D,
            transcendentals=0,
            bytes_accessed=in_b * (E * N * D + E * D * D) + out_b * E * N * D,
        ),
    )(x, w1)


# ----------------------------------- wrapper --------------------------------------
def experts_forward(x, w1, *, compute_dtype=None, path="auto", tile_n=None):
    """out = ReLU(einsum('end,edh->enh', x, w1)).

    x: (E, N, D), w1: (E, D, D) -> (E, N, D) in x's original dtype.
    compute_dtype: e.g. jnp.bfloat16 for v6e/v7x MXU peak (f32 accumulation kept).
    """
    E, N, D = x.shape
    assert w1.shape == (E, D, D)
    out_dtype = x.dtype
    if compute_dtype is not None:
        x = x.astype(compute_dtype)
        w1 = w1.astype(compute_dtype)

    if path == "auto":
        itemsize = jnp.dtype(x.dtype).itemsize
        # whole problem + double-buffer margin must sit comfortably in VMEM
        vmem_bytes = 2 * itemsize * (E * N * D + E * D * D + N * E * D)
        path = "packed" if (vmem_bytes <= 8 * 1024 * 1024 and E <= 64) else "tiled"

    if path == "packed":
        return _experts_packed(x, w1, out_dtype)
    return _experts_tiled(x, w1, out_dtype, tile_n)


if __name__ == "__main__":
    # Small shapes consistent with the module: hidden=32, num_experts=4, 8 tokens/expert.
    dim = 32
    num_experts = 4
    n_tokens = 8

    key = jax.random.PRNGKey(0)
    k_x, k_w = jax.random.split(key)
    w1 = jax.random.normal(k_w, (num_experts, dim, dim), dtype=jnp.float32)
    x = jax.random.normal(k_x, (num_experts, n_tokens, dim), dtype=jnp.float32)

    out = jax.block_until_ready(experts_forward(x, w1))           # packed path
    ref = jnp.maximum(
        jnp.einsum("end,edh->enh", x, w1, precision=jax.lax.Precision.HIGHEST), 0.0
    )
    assert out.shape == (num_experts, n_tokens, dim)
    assert jnp.allclose(out, ref, atol=1e-5, rtol=1e-5)

    # Exercise the tiled fallback path (production-shape structure) at a small size.
    E2, N2, D2 = 2, 256, 128
    k_x2, k_w2 = jax.random.split(jax.random.PRNGKey(1))
    w2 = jax.random.normal(k_w2, (E2, D2, D2), dtype=jnp.float32)
    x2 = jax.random.normal(k_x2, (E2, N2, D2), dtype=jnp.float32)
    out2 = jax.block_until_ready(experts_forward(x2, w2, path="tiled", tile_n=128))
    ref2 = jnp.maximum(
        jnp.einsum("end,edh->enh", x2, w2, precision=jax.lax.Precision.HIGHEST), 0.0
    )
    assert out2.shape == (E2, N2, D2)
    assert jnp.allclose(out2, ref2, atol=1e-3, rtol=1e-3)

    print("KERNEL_OK")
</pallas_src>

<mosaic_0001>
module attributes {stable_mosaic.version = 11 : i64} {
  func.func @_experts_packed_kernel(%arg0: i32, %arg1: memref<4x8x32xf32, #tpu.memory_space<vmem>>, %arg2: memref<4x32x32xf32, #tpu.memory_space<vmem>>, %arg3: memref<8x128xf32, #tpu.memory_space<vmem>>) attributes {dimension_semantics = [#tpu.dimension_semantics<arbitrary>], iteration_bounds = array<i64: 1>, scalar_prefetch = 0 : i64, scratch_operands = 0 : i64, tpu.core_type = #tpu.core_type<tc>, window_params = [{pipeline_mode = #tpu.pipeline_mode<synchronous>, transform_indices = @transform_0, window_bounds = array<i64: 4, 8, 32>}, {pipeline_mode = #tpu.pipeline_mode<synchronous>, transform_indices = @transform_1, window_bounds = array<i64: 4, 32, 32>}, {pipeline_mode = #tpu.pipeline_mode<synchronous>, transform_indices = @transform_2, window_bounds = array<i64: 8, 128>}]} {
    %c0 = arith.constant 0 : index
    %c0_0 = arith.constant 0 : index
    %c0_1 = arith.constant 0 : index
    %0 = vector.load %arg1[%c0, %c0_0, %c0_1] : memref<4x8x32xf32, #tpu.memory_space<vmem>>, vector<1x8x32xf32>
    %1 = vector.shape_cast %0 : vector<1x8x32xf32> to vector<8x32xf32>
    %c0_2 = arith.constant 0 : index
    %c0_3 = arith.constant 0 : index
    %c0_4 = arith.constant 0 : index
    %2 = vector.load %arg2[%c0_2, %c0_3, %c0_4] : memref<4x32x32xf32, #tpu.memory_space<vmem>>, vector<1x32x32xf32>
    %3 = vector.shape_cast %2 : vector<1x32x32xf32> to vector<32x32xf32>
    %cst = arith.constant dense<0.000000e+00> : vector<8x32xf32>
    %4 = tpu.matmul %1, %3, %cst {dimension_numbers = #tpu.dot_dimension_numbers<[1], [0], [0], [1], [0, 0, 1, 1], [], []>} : vector<8x32xf32>, vector<32x32xf32>, vector<8x32xf32> -> vector<8x32xf32>
    %cst_5 = arith.constant 0.000000e+00 : f32
    %5 = vector.broadcast %cst_5 : f32 to vector<8x32xf32>
    %6 = arith.maximumf %4, %5 : vector<8x32xf32>
    %c1 = arith.constant 1 : index
    %c0_6 = arith.constant 0 : index
    %c0_7 = arith.constant 0 : index
    %7 = vector.load %arg1[%c1, %c0_6, %c0_7] : memref<4x8x32xf32, #tpu.memory_space<vmem>>, vector<1x8x32xf32>
    %8 = vector.shape_cast %7 : vector<1x8x32xf32> to vector<8x32xf32>
    %c1_8 = arith.constant 1 : index
    %c0_9 = arith.constant 0 : index
    %c0_10 = arith.constant 0 : index
    %9 = vector.load %arg2[%c1_8, %c0_9, %c0_10] : memref<4x32x32xf32, #tpu.memory_space<vmem>>, vector<1x32x32xf32>
    %10 = vector.shape_cast %9 : vector<1x32x32xf32> to vector<32x32xf32>
    %cst_11 = arith.constant dense<0.000000e+00> : vector<8x32xf32>
    %11 = tpu.matmul %8, %10, %cst_11 {dimension_numbers = #tpu.dot_dimension_numbers<[1], [0], [0], [1], [0, 0, 1, 1], [], []>} : vector<8x32xf32>, vector<32x32xf32>, vector<8x32xf32> -> vector<8x32xf32>
    %cst_12 = arith.constant 0.000000e+00 : f32
    %12 = vector.broadcast %cst_12 : f32 to vector<8x32xf32>
    %13 = arith.maximumf %11, %12 : vector<8x32xf32>
    %c2 = arith.constant 2 : index
    %c0_13 = arith.constant 0 : index
    %c0_14 = arith.constant 0 : index
    %14 = vector.load %arg1[%c2, %c0_13, %c0_14] : memref<4x8x32xf32, #tpu.memory_space<vmem>>, vector<1x8x32xf32>
    %15 = vector.shape_cast %14 : vector<1x8x32xf32> to vector<8x32xf32>
    %c2_15 = arith.constant 2 : index
    %c0_16 = arith.constant 0 : index
    %c0_17 = arith.constant 0 : index
    %16 = vector.load %arg2[%c2_15, %c0_16, %c0_17] : memref<4x32x32xf32, #tpu.memory_space<vmem>>, vector<1x32x32xf32>
    %17 = vector.shape_cast %16 : vector<1x32x32xf32> to vector<32x32xf32>
    %cst_18 = arith.constant dense<0.000000e+00> : vector<8x32xf32>
    %18 = tpu.matmul %15, %17, %cst_18 {dimension_numbers = #tpu.dot_dimension_numbers<[1], [0], [0], [1], [0, 0, 1, 1], [], []>} : vector<8x32xf32>, vector<32x32xf32>, vector<8x32xf32> -> vector<8x32xf32>
    %cst_19 = arith.constant 0.000000e+00 : f32
    %19 = vector.broadcast %cst_19 : f32 to vector<8x32xf32>
    %20 = arith.maximumf %18, %19 : vector<8x32xf32>
    %c3 = arith.constant 3 : index
    %c0_20 = arith.constant 0 : index
    %c0_21 = arith.constant 0 : index
    %21 = vector.load %arg1[%c3, %c0_20, %c0_21] : memref<4x8x32xf32, #tpu.memory_space<vmem>>, vector<1x8x32xf32>
    %22 = vector.shape_cast %21 : vector<1x8x32xf32> to vector<8x32xf32>
    %c3_22 = arith.constant 3 : index
    %c0_23 = arith.constant 0 : index
    %c0_24 = arith.constant 0 : index
    %23 = vector.load %arg2[%c3_22, %c0_23, %c0_24] : memref<4x32x32xf32, #tpu.memory_space<vmem>>, vector<1x32x32xf32>
    %24 = vector.shape_cast %23 : vector<1x32x32xf32> to vector<32x32xf32>
    %cst_25 = arith.constant dense<0.000000e+00> : vector<8x32xf32>
    %25 = tpu.matmul %22, %24, %cst_25 {dimension_numbers = #tpu.dot_dimension_numbers<[1], [0], [0], [1], [0, 0, 1, 1], [], []>} : vector<8x32xf32>, vector<32x32xf32>, vector<8x32xf32> -> vector<8x32xf32>
    %cst_26 = arith.constant 0.000000e+00 : f32
    %26 = vector.broadcast %cst_26 : f32 to vector<8x32xf32>
    %27 = arith.maximumf %25, %26 : vector<8x32xf32>
    %28 = tpu.concatenate %6, %13, %20, %27 in 1 : vector<8x32xf32>, vector<8x32xf32>, vector<8x32xf32>, vector<8x32xf32> -> vector<8x128xf32>
    %c0_27 = arith.constant 0 : index
    %c0_28 = arith.constant 0 : index
    %29 = vector.load %arg3[%c0_27, %c0_28] : memref<8x128xf32, #tpu.memory_space<vmem>>, vector<8x128xf32>
    tpu.vector_store %arg3[%c0_27, %c0_28], %28 {strides = array<i32>} : memref<8x128xf32, #tpu.memory_space<vmem>>, vector<8x128xf32>,
    return
  }
  func.func @transform_0(%arg0: i32) -> (i32, i32, i32) {
    %c0_i32 = arith.constant 0 : i32
    %c0_i32_0 = arith.constant 0 : i32
    %c0_i32_1 = arith.constant 0 : i32
    %c0_i32_2 = arith.constant 0 : i32
    return %c0_i32, %c0_i32_0, %c0_i32_1 : i32, i32, i32
  }
  func.func @transform_1(%arg0: i32) -> (i32, i32, i32) {
    %c0_i32 = arith.constant 0 : i32
    %c0_i32_0 = arith.constant 0 : i32
    %c0_i32_1 = arith.constant 0 : i32
    %c0_i32_2 = arith.constant 0 : i32
    return %c0_i32, %c0_i32_0, %c0_i32_1 : i32, i32, i32
  }
  func.func @transform_2(%arg0: i32) -> (i32, i32) {
    %c0_i32 = arith.constant 0 : i32
    %c0_i32_0 = arith.constant 0 : i32
    %c0_i32_1 = arith.constant 0 : i32
    return %c0_i32, %c0_i32_0 : i32, i32
  }
}

</mosaic_0001>

<llo_original>
// kernel: tpu_custom_call.1
$region0: #{tpu_custom_call.1}
  #allocation0 [shape = 'u32[]', space=smem, size = 0x4, offset = 0x4, fixed_abs, tag = 'smem constant byte address 0x4 - core index']
  #allocation1 [shape = 'u32[144,128]{1,0:T(1,128)}', space=vmem, size = 0x12000, scoped, tag = 'internal scratch']
  %s0 = inlined_call_operand.hbm [shape: f32[4,8,32], index: 0, kind: input, shape index: {}]
  %s1 = inlined_call_operand.hbm [shape: f32[4,32,32], index: 1, kind: input, shape index: {}]
  %s2 = inlined_call_operand.hbm [shape: f32[8,128], index: 2, kind: output, shape index: {}]
  %s3 = sld [smem:[#allocation0]]
  $region26: #{tpu_custom_call.1} parent=0
    _
  %s5 = ssub.s32 1, %s3
  %s6 = scalar_select 0, %s5, %s3
  $region1: #{tpu_custom_call.1} parent=0
    #allocation2 [shape = 'u8[16384]{0}', space=vmem, size = 0x4000, scoped, tag = 'input window, operand 0, single buffered']
    #allocation3 [shape = 's32[1]{0}', space=sflag, size = 0x4, scoped, tag = 'scoped memory for tpu_custom_call.1']
    #allocation4 [shape = 's32[1]{0}', space=sflag, size = 0x4, scoped, tag = 'scoped memory for tpu_custom_call.1']
    #allocation5 [shape = 'u8[65536]{0}', space=vmem, size = 0x10000, scoped, tag = 'input window, operand 1, single buffered']
    #allocation6 [shape = 's32[1]{0}', space=sflag, size = 0x4, scoped, tag = 'scoped memory for tpu_custom_call.1']
    #allocation7 [shape = 'u8[4096]{0}', space=vmem, size = 0x1000, scoped, tag = 'output window, operand 0, single buffered']
    %7 = vsyncpa [#allocation3], 0
    %8 = vsyncpa [#allocation6], 0
    %9 = vsyncpa [#allocation4], 0
    // Predicated region
    $region2: #{tpu_custom_call.1} parent=1 // pred_check
      _
    $region3: #{tpu_custom_call.1} parent=1 // pred_check_branch
      %11 = sbr.rel (0) target = $region5
    $region4: #{tpu_custom_call.1} parent=1 // pred_region
      %s13 = ssub.s32 512, 512
      %14 = vsyncadd [#allocation3], %s13
      %s15 = sshll.u32 [#allocation2], 4
      %s16 = int_to_ptr.vmem [resolvable:$true] %s15
      %21 = dma.hbm_to_vmem [thread:$0]  %s0, 512, %s16, [#allocation3], 128, 128, 8
    $region5: #{tpu_custom_call.1} parent=1 // pred_fallthru
      _
    // Predicated region
    $region6: #{tpu_custom_call.1} parent=1 // pred_check
      _
    $region7: #{tpu_custom_call.1} parent=1 // pred_check_branch
      %23 = sbr.rel (0) target = $region9
    $region8: #{tpu_custom_call.1} parent=1 // pred_region
      %s25 = ssub.s32 2048, 2048
      %26 = vsyncadd [#allocation6], %s25
      %s27 = sshll.u32 [#allocation5], 4
      %s28 = int_to_ptr.vmem [resolvable:$true] %s27
      %33 = dma.hbm_to_vmem [thread:$0]  %s1, 2048, %s28, [#allocation6], 128, 128, 8
    $region9: #{tpu_custom_call.1} parent=1 // pred_fallthru
      _
    // Predicated region
    $region10: #{tpu_custom_call.1} parent=1 // pred_check
      _
    $region11: #{tpu_custom_call.1} parent=1 // pred_check_branch
      %35 = sbr.rel (0) target = $region13
    $region12: #{tpu_custom_call.1} parent=1 // pred_region
      %36 = dma.done [#allocation3], 512
    $region13: #{tpu_custom_call.1} parent=1 // pred_fallthru
      _
    // Predicated region
    $region14: #{tpu_custom_call.1} parent=1 // pred_check
      _
    $region15: #{tpu_custom_call.1} parent=1 // pred_check_branch
      %38 = sbr.rel (0) target = $region17
    $region16: #{tpu_custom_call.1} parent=1 // pred_region
      %39 = dma.done [#allocation6], 2048
    $region17: #{tpu_custom_call.1} parent=1 // pred_fallthru
      _
    %v40 = vld [vmem:[#allocation2] sm:$0xff]
    %v41 = vld [vmem:[#allocation5] sm:$0xff]
    %v42 = vld [vmem:[#allocation5 + $0x8] sm:$0xff]
    %v43 = vld [vmem:[#allocation5 + $0x10] sm:$0xff]
    %v44 = vld [vmem:[#allocation5 + $0x18] sm:$0xff]
    %vm45 = vcmask 261120
    %v47 = vsel %vm45, %v40, 0
    %49 = vmatprep.subr.mxu0 0.0
    %50 = vmatpush1.msra.mxu0 0.0
    %51 = vmatprep.subr.mxu0 0.0
    %52 = vmatpush1.msra.mxu0 0.0
    %53 = vmatprep.subr.mxu0 0.0
    %54 = vmatpush1.msra.mxu0 0.0
    %55 = vmatprep.subr.mxu0 0.0
    %56 = vmatpush1.msra.mxu0 0.0
    %57 = vmatprep.subr.mxu0 0.0
    %58 = vmatpush1.msra.mxu0 0.0
    %59 = vmatprep.subr.mxu0 0.0
    %60 = vmatpush1.msra.mxu0 0.0
    %61 = vmatprep.subr.mxu0 0.0
    %62 = vmatpush1.msra.mxu0 0.0
    %63 = vmatprep.subr.mxu0 0.0
    %64 = vmatpush1.msra.mxu0 0.0
    %65 = vmatprep.subr.mxu0 0.0
    %66 = vmatpush1.msra.mxu0 0.0
    %67 = vmatprep.subr.mxu0 0.0
    %68 = vmatpush1.msra.mxu0 0.0
    %69 = vmatprep.subr.mxu0 0.0
    %70 = vmatpush1.msra.mxu0 0.0
    %71 = vmatprep.subr.mxu0 0.0
    %72 = vmatpush1.msra.mxu0 0.0
    %73 = vmatprep.subr.mxu0 0.0
    %74 = vmatpush1.msra.mxu0 %v44
    %75 = vmatprep.subr.mxu0 0.0
    %76 = vmatpush1.msra.mxu0 %v43
    %77 = vmatprep.subr.mxu0 0.0
    %78 = vmatpush1.msra.mxu0 %v42
    %79 = vmatprep.subr.mxu0 0.0
    %80 = vmatpush1.msra.mxu0 %v41
    %81 = vmatprep.subr.mxu0 0.0
    %82 = vmatpush2.msra.mxu0 0.0
    %83 = vmatprep.subr.mxu0 0.0
    %84 = vmatpush2.msra.mxu0 0.0
    %85 = vmatprep.subr.mxu0 0.0
    %86 = vmatpush2.msra.mxu0 0.0
    %87 = vmatprep.subr.mxu0 0.0
    %88 = vmatpush2.msra.mxu0 0.0
    %89 = vmatprep.subr.mxu0 0.0
    %90 = vmatpush2.msra.mxu0 0.0
    %91 = vmatprep.subr.mxu0 0.0
    %92 = vmatpush2.msra.mxu0 0.0
    %93 = vmatprep.subr.mxu0 0.0
    %94 = vmatpush2.msra.mxu0 0.0
    %95 = vmatprep.subr.mxu0 0.0
    %96 = vmatpush2.msra.mxu0 0.0
    %97 = vmatprep.subr.mxu0 0.0
    %98 = vmatpush2.msra.mxu0 0.0
    %99 = vmatprep.subr.mxu0 0.0
    %100 = vmatpush2.msra.mxu0 0.0
    %101 = vmatprep.subr.mxu0 0.0
    %102 = vmatpush2.msra.mxu0 0.0
    %103 = vmatprep.subr.mxu0 0.0
    %104 = vmatpush2.msra.mxu0 0.0
    %105 = vmatprep.subr.mxu0 0.0
    %106 = vmatpush2.msra.mxu0 0.0
    %107 = vmatprep.subr.mxu0 0.0
    %108 = vmatpush2.msra.mxu0 0.0
    %109 = vmatprep.subr.mxu0 0.0
    %110 = vmatpush2.msra.mxu0 0.0
    %111 = vmatprep.subr.mxu0 0.0
    %112 = vmatpush2.msra.mxu0 0.0
    %113 = vmatprep.mubr.f32.mxu0 0.0
    %114 = vmatmul.mubr.f32.gmra.mxu0 %v47
    %v115 = vpop.f32.mrf.mxu0
    %v116 = vadd.f32 0.0, %v115
    %v117 = vpop.f32.mrf.mxu0
    %118 = vdwg.mxu0
    %v119 = vmax.f32 %v116, 0.0
    %s120 = scalar_lea.vmem [#allocation2], 8
    %v121 = vld [vmem:[%s120] sm:$0xff]
    %s122 = scalar_lea.vmem [#allocation5], 32
    %v123 = vld [vmem:[%s122] sm:$0xff]
    %v124 = vld [vmem:[%s122 + $0x8] sm:$0xff]
    %v125 = vld [vmem:[%s122 + $0x10] sm:$0xff]
    %v126 = vld [vmem:[%s122 + $0x18] sm:$0xff]
    %v128 = vsel %vm45, %v121, 0
    %130 = vmatprep.subr.mxu0 0.0
    %131 = vmatpush1.msra.mxu0 0.0
    %132 = vmatprep.subr.mxu0 0.0
    %133 = vmatpush1.msra.mxu0 0.0
    %134 = vmatprep.subr.mxu0 0.0
    %135 = vmatpush1.msra.mxu0 0.0
    %136 = vmatprep.subr.mxu0 0.0
    %137 = vmatpush1.msra.mxu0 0.0
    %138 = vmatprep.subr.mxu0 0.0
    %139 = vmatpush1.msra.mxu0 0.0
    %140 = vmatprep.subr.mxu0 0.0
    %141 = vmatpush1.msra.mxu0 0.0
    %142 = vmatprep.subr.mxu0 0.0
    %143 = vmatpush1.msra.mxu0 0.0
    %144 = vmatprep.subr.mxu0 0.0
    %145 = vmatpush1.msra.mxu0 0.0
    %146 = vmatprep.subr.mxu0 0.0
    %147 = vmatpush1.msra.mxu0 0.0
    %148 = vmatprep.subr.mxu0 0.0
    %149 = vmatpush1.msra.mxu0 0.0
    %150 = vmatprep.subr.mxu0 0.0
    %151 = vmatpush1.msra.mxu0 0.0
    %152 = vmatprep.subr.mxu0 0.0
    %153 = vmatpush1.msra.mxu0 0.0
    %154 = vmatprep.subr.mxu0 0.0
    %155 = vmatpush1.msra.mxu0 %v126
    %156 = vmatprep.subr.mxu0 0.0
    %157 = vmatpush1.msra.mxu0 %v125
    %158 = vmatprep.subr.mxu0 0.0
    %159 = vmatpush1.msra.mxu0 %v124
    %160 = vmatprep.subr.mxu0 0.0
    %161 = vmatpush1.msra.mxu0 %v123
    %162 = vmatprep.subr.mxu0 0.0
    %163 = vmatpush2.msra.mxu0 0.0
    %164 = vmatprep.subr.mxu0 0.0
    %165 = vmatpush2.msra.mxu0 0.0
    %166 = vmatprep.subr.mxu0 0.0
    %167 = vmatpush2.msra.mxu0 0.0
    %168 = vmatprep.subr.mxu0 0.0
    %169 = vmatpush2.msra.mxu0 0.0
    %170 = vmatprep.subr.mxu0 0.0
    %171 = vmatpush2.msra.mxu0 0.0
    %172 = vmatprep.subr.mxu0 0.0
    %173 = vmatpush2.msra.mxu0 0.0
    %174 = vmatprep.subr.mxu0 0.0
    %175 = vmatpush2.msra.mxu0 0.0
    %176 = vmatprep.subr.mxu0 0.0
    %177 = vmatpush2.msra.mxu0 0.0
    %178 = vmatprep.subr.mxu0 0.0
    %179 = vmatpush2.msra.mxu0 0.0
    %180 = vmatprep.subr.mxu0 0.0
    %181 = vmatpush2.msra.mxu0 0.0
    %182 = vmatprep.subr.mxu0 0.0
    %183 = vmatpush2.msra.mxu0 0.0
    %184 = vmatprep.subr.mxu0 0.0
    %185 = vmatpush2.msra.mxu0 0.0
    %186 = vmatprep.subr.mxu0 0.0
    %187 = vmatpush2.msra.mxu0 0.0
    %188 = vmatprep.subr.mxu0 0.0
    %189 = vmatpush2.msra.mxu0 0.0
    %190 = vmatprep.subr.mxu0 0.0
    %191 = vmatpush2.msra.mxu0 0.0
    %192 = vmatprep.subr.mxu0 0.0
    %193 = vmatpush2.msra.mxu0 0.0
    %194 = vmatprep.mubr.f32.mxu0 0.0
    %195 = vmatmul.mubr.f32.gmra.mxu0 %v128
    %v196 = vpop.f32.mrf.mxu0
    %v197 = vadd.f32 0.0, %v196
    %v198 = vpop.f32.mrf.mxu0
    %199 = vdwg.mxu0
    %v200 = vmax.f32 %v197, 0.0
    %s201 = scalar_lea.vmem [#allocation2], 16
    %v202 = vld [vmem:[%s201] sm:$0xff]
    %s203 = scalar_lea.vmem [#allocation5], 64
    %v204 = vld [vmem:[%s203] sm:$0xff]
    %v205 = vld [vmem:[%s203 + $0x8] sm:$0xff]
    %v206 = vld [vmem:[%s203 + $0x10] sm:$0xff]
    %v207 = vld [vmem:[%s203 + $0x18] sm:$0xff]
    %v209 = vsel %vm45, %v202, 0
    %211 = vmatprep.subr.mxu0 0.0
    %212 = vmatpush1.msra.mxu0 0.0
    %213 = vmatprep.subr.mxu0 0.0
    %214 = vmatpush1.msra.mxu0 0.0
    %215 = vmatprep.subr.mxu0 0.0
    %216 = vmatpush1.msra.mxu0 0.0
    %217 = vmatprep.subr.mxu0 0.0
    %218 = vmatpush1.msra.mxu0 0.0
    %219 = vmatprep.subr.mxu0 0.0
    %220 = vmatpush1.msra.mxu0 0.0
    %221 = vmatprep.subr.mxu0 0.0
    %222 = vmatpush1.msra.mxu0 0.0
    %223 = vmatprep.subr.mxu0 0.0
    %224 = vmatpush1.msra.mxu0 0.0
    %225 = vmatprep.subr.mxu0 0.0
    %226 = vmatpush1.msra.mxu0 0.0
    %227 = vmatprep.subr.mxu0 0.0
    %228 = vmatpush1.msra.mxu0 0.0
    %229 = vmatprep.subr.mxu0 0.0
    %230 = vmatpush1.msra.mxu0 0.0
    %231 = vmatprep.subr.mxu0 0.0
    %232 = vmatpush1.msra.mxu0 0.0
    %233 = vmatprep.subr.mxu0 0.0
    %234 = vmatpush1.msra.mxu0 0.0
    %235 = vmatprep.subr.mxu0 0.0
    %236 = vmatpush1.msra.mxu0 %v207
    %237 = vmatprep.subr.mxu0 0.0
    %238 = vmatpush1.msra.mxu0 %v206
    %239 = vmatprep.subr.mxu0 0.0
    %240 = vmatpush1.msra.mxu0 %v205
    %241 = vmatprep.subr.mxu0 0.0
    %242 = vmatpush1.msra.mxu0 %v204
    %243 = vmatprep.subr.mxu0 0.0
    %244 = vmatpush2.msra.mxu0 0.0
    %245 = vmatprep.subr.mxu0 0.0
    %246 = vmatpush2.msra.mxu0 0.0
    %247 = vmatprep.subr.mxu0 0.0
    %248 = vmatpush2.msra.mxu0 0.0
    %249 = vmatprep.subr.mxu0 0.0
    %250 = vmatpush2.msra.mxu0 0.0
    %251 = vmatprep.subr.mxu0 0.0
    %252 = vmatpush2.msra.mxu0 0.0
    %253 = vmatprep.subr.mxu0 0.0
    %254 = vmatpush2.msra.mxu0 0.0
    %255 = vmatprep.subr.mxu0 0.0
    %256 = vmatpush2.msra.mxu0 0.0
    %257 = vmatprep.subr.mxu0 0.0
    %258 = vmatpush2.msra.mxu0 0.0
    %259 = vmatprep.subr.mxu0 0.0
    %260 = vmatpush2.msra.mxu0 0.0
    %261 = vmatprep.subr.mxu0 0.0
    %262 = vmatpush2.msra.mxu0 0.0
    %263 = vmatprep.subr.mxu0 0.0
    %264 = vmatpush2.msra.mxu0 0.0
    %265 = vmatprep.subr.mxu0 0.0
    %266 = vmatpush2.msra.mxu0 0.0
    %267 = vmatprep.subr.mxu0 0.0
    %268 = vmatpush2.msra.mxu0 0.0
    %269 = vmatprep.subr.mxu0 0.0
    %270 = vmatpush2.msra.mxu0 0.0
    %271 = vmatprep.subr.mxu0 0.0
    %272 = vmatpush2.msra.mxu0 0.0
    %273 = vmatprep.subr.mxu0 0.0
    %274 = vmatpush2.msra.mxu0 0.0
    %275 = vmatprep.mubr.f32.mxu0 0.0
    %276 = vmatmul.mubr.f32.gmra.mxu0 %v209
    %v277 = vpop.f32.mrf.mxu0
    %v278 = vadd.f32 0.0, %v277
    %v279 = vpop.f32.mrf.mxu0
    %280 = vdwg.mxu0
    %v281 = vmax.f32 %v278, 0.0
    %s282 = scalar_lea.vmem [#allocation2], 24
    %v283 = vld [vmem:[%s282] sm:$0xff]
    %s284 = scalar_lea.vmem [#allocation5], 96
    %v285 = vld [vmem:[%s284] sm:$0xff]
    %v286 = vld [vmem:[%s284 + $0x8] sm:$0xff]
    %v287 = vld [vmem:[%s284 + $0x10] sm:$0xff]
    %v288 = vld [vmem:[%s284 + $0x18] sm:$0xff]
    %v290 = vsel %vm45, %v283, 0
    %292 = vmatprep.subr.mxu0 0.0
    %293 = vmatpush1.msra.mxu0 0.0
    %294 = vmatprep.subr.mxu0 0.0
    %295 = vmatpush1.msra.mxu0 0.0
    %296 = vmatprep.subr.mxu0 0.0
    %297 = vmatpush1.msra.mxu0 0.0
    %298 = vmatprep.subr.mxu0 0.0
    %299 = vmatpush1.msra.mxu0 0.0
    %300 = vmatprep.subr.mxu0 0.0
    %301 = vmatpush1.msra.mxu0 0.0
    %302 = vmatprep.subr.mxu0 0.0
    %303 = vmatpush1.msra.mxu0 0.0
    %304 = vmatprep.subr.mxu0 0.0
    %305 = vmatpush1.msra.mxu0 0.0
    %306 = vmatprep.subr.mxu0 0.0
    %307 = vmatpush1.msra.mxu0 0.0
    %308 = vmatprep.subr.mxu0 0.0
    %309 = vmatpush1.msra.mxu0 0.0
    %310 = vmatprep.subr.mxu0 0.0
    %311 = vmatpush1.msra.mxu0 0.0
    %312 = vmatprep.subr.mxu0 0.0
    %313 = vmatpush1.msra.mxu0 0.0
    %314 = vmatprep.subr.mxu0 0.0
    %315 = vmatpush1.msra.mxu0 0.0
    %316 = vmatprep.subr.mxu0 0.0
    %317 = vmatpush1.msra.mxu0 %v288
    %318 = vmatprep.subr.mxu0 0.0
    %319 = vmatpush1.msra.mxu0 %v287
    %320 = vmatprep.subr.mxu0 0.0
    %321 = vmatpush1.msra.mxu0 %v286
    %322 = vmatprep.subr.mxu0 0.0
    %323 = vmatpush1.msra.mxu0 %v285
    %324 = vmatprep.subr.mxu0 0.0
    %325 = vmatpush2.msra.mxu0 0.0
    %326 = vmatprep.subr.mxu0 0.0
    %327 = vmatpush2.msra.mxu0 0.0
    %328 = vmatprep.subr.mxu0 0.0
    %329 = vmatpush2.msra.mxu0 0.0
    %330 = vmatprep.subr.mxu0 0.0
    %331 = vmatpush2.msra.mxu0 0.0
    %332 = vmatprep.subr.mxu0 0.0
    %333 = vmatpush2.msra.mxu0 0.0
    %334 = vmatprep.subr.mxu0 0.0
    %335 = vmatpush2.msra.mxu0 0.0
    %336 = vmatprep.subr.mxu0 0.0
    %337 = vmatpush2.msra.mxu0 0.0
    %338 = vmatprep.subr.mxu0 0.0
    %339 = vmatpush2.msra.mxu0 0.0
    %340 = vmatprep.subr.mxu0 0.0
    %341 = vmatpush2.msra.mxu0 0.0
    %342 = vmatprep.subr.mxu0 0.0
    %343 = vmatpush2.msra.mxu0 0.0
    %344 = vmatprep.subr.mxu0 0.0
    %345 = vmatpush2.msra.mxu0 0.0
    %346 = vmatprep.subr.mxu0 0.0
    %347 = vmatpush2.msra.mxu0 0.0
    %348 = vmatprep.subr.mxu0 0.0
    %349 = vmatpush2.msra.mxu0 0.0
    %350 = vmatprep.subr.mxu0 0.0
    %351 = vmatpush2.msra.mxu0 0.0
    %352 = vmatprep.subr.mxu0 0.0
    %353 = vmatpush2.msra.mxu0 0.0
    %354 = vmatprep.subr.mxu0 0.0
    %355 = vmatpush2.msra.mxu0 0.0
    %356 = vmatprep.mubr.f32.mxu0 0.0
    %357 = vmatmul.mubr.f32.gmra.mxu0 %v290
    %v358 = vpop.f32.mrf.mxu0
    %v359 = vadd.f32 0.0, %v358
    %v360 = vpop.f32.mrf.mxu0
    %361 = vdwg.mxu0
    %v362 = vmax.f32 %v359, 0.0
    %364 = vrot.lane.b32.xlu0 %v200, 32
    %v365 = vpop.permute.xlu0 %364
    %368 = vrot.lane.b32.xlu0 %v281, 64
    %v369 = vpop.permute.xlu0 %368
    %372 = vrot.lane.b32.xlu0 %v362, 96
    %v373 = vpop.permute.xlu0 %372
    %v375 = vsel %vm45, %v119, %v365
    %vm376 = vcmask 523264
    %v377 = vsel %vm376, %v375, %v369
    %vm378 = vcmask 785408
    %v379 = vsel %vm378, %v377, %v373
    %380 = vst [vmem:[#allocation7] sm:$0xff] %v379
    // Predicated region
    $region18: #{tpu_custom_call.1} parent=1 // pred_check
      _
    $region19: #{tpu_custom_call.1} parent=1 // pred_check_branch
      %382 = sbr.rel (0) target = $region21
    $region20: #{tpu_custom_call.1} parent=1 // pred_region
      %s384 = ssub.s32 128, 128
      %385 = vsyncadd [#allocation4], %s384
      %s387 = sshll.u32 [#allocation7], 4
      %s388 = int_to_ptr.vmem [resolvable:$true] %s387
      %390 = dma.vmem_to_hbm [thread:$0]  %s388, 128, %s2, [#allocation4]
    $region21: #{tpu_custom_call.1} parent=1 // pred_fallthru
      _
    // Predicated region
    $region22: #{tpu_custom_call.1} parent=1 // pred_check
      _
    $region23: #{tpu_custom_call.1} parent=1 // pred_check_branch
      %392 = sbr.rel (0) target = $region25
    $region24: #{tpu_custom_call.1} parent=1 // pred_region
      %393 = dma.done [#allocation4], 128
    $region25: #{tpu_custom_call.1} parent=1 // pred_fallthru
      _
    %394 = vsyncpa [#allocation3], 1
    %395 = vsyncpa [#allocation6], 1
    %396 = vsyncpa [#allocation4], 1

</llo_original>
